<compile_context>
chip_gen: v5e
topology: v5e:2x2
jax: 0.10.0
libtpu: 0.0.40
codegen_flags: <defaults>
</compile_context>

<pallas_src>
import jax
import jax.numpy as jnp
from jax.experimental import pallas as pl
from jax.experimental.pallas import tpu as pltpu


def _conv1x1_scale_bias_kernel(w_ref, b_ref, x_ref, o_ref):
    """out[:, o, :, :] = x[:, 0, :, :] * w[o] + b[o]   (pure VPU, no MXU).

    w_ref, b_ref: (Cout,) f32 scalars in SMEM.
    x_ref:        (bn, 1,    bs, 128) VMEM block (sublane/lane dense).
    o_ref:        (bn, Cout, bs, 128) VMEM block (sublane/lane dense).
    """
    x = x_ref[:, 0, :, :]                     # (bn, bs, 128) dense slab
    cout = o_ref.shape[1]
    # Hoist SMEM scalar reads out of the (static, unrolled, Cout==3) channel loop.
    w = [w_ref[o] for o in range(cout)]
    b = [b_ref[o] for o in range(cout)]
    for o in range(cout):
        # Full (bn, bs, 128) slab per channel: bs is a multiple of 8 (or the full extent),
        # so every store is an unmasked, dense vst.
        o_ref[:, o, :, :] = (x * w[o] + b[o]).astype(o_ref.dtype)


def _choose_tiling(N, Cout, S, itemsize):
    """Pick (bn, bs) for blocks (bn, 1, bs, 128) / (bn, Cout, bs, 128).

    Targets ~1 MiB of *input* per grid step => ~(1+Cout) MiB of traffic per step and a
    ~2*(1+Cout) MiB double-buffered VMEM footprint -- safe on v5e/v6e/v7x.
    """
    cap_rows = max(8, ((1 << 20) // itemsize) // 128)   # 128-lane rows of input per step

    if N * S <= cap_rows:
        # Whole problem fits in one step: fold the batch into the block.
        bn, bs = N, S
        # Keep the grid splittable across v7x's 2 TensorCores when the single-step block is
        # large enough that the extra step overhead is negligible.
        step_bytes = bn * (1 + Cout) * bs * 128 * itemsize
        if step_bytes >= (2 << 20):
            if bs % 16 == 0:
                bs //= 2
            elif bn % 2 == 0:
                bn //= 2
        return bn, bs

    if S <= cap_rows:
        # Full spatial plane per step; batch as many images per block as fit.
        bn = max(1, cap_rows // S)
        while N % bn:
            bn -= 1
        return bn, S

    # Tile the spatial axis; bs must stay a multiple of 8 (sublane-dense) and divide S.
    bs = (cap_rows // 8) * 8
    while S % bs:
        bs -= 8
    return 1, bs


def conv1x1_cin1_nchw(x_nchw, weight_oi, bias_o):
    """1x1 conv with bias, matching nn.Conv2d(1, Cout, 1, stride=1, padding=0).

    Computed natively in NCHW as out[n, o, h, w] = x[n, 0, h, w] * w[o] + b[o].

    x_nchw:    (N, 1, H, W)
    weight_oi: (Cout, Cin=1)   -- PyTorch conv weight (Cout, Cin, 1, 1) squeezed
    bias_o:    (Cout,)
    """
    N, Cin, H, W = x_nchw.shape
    assert Cin == 1, "conv1 in the reference model has in_channels=1"
    Cout = weight_oi.shape[0]
    HW = H * W

    # Pad HW to a multiple of 1024 (= 8 sublanes * 128 lanes) so both trailing block dims are
    # dense (8,128) tiles -> unmasked vld/vst. Padding is one cheap, fusable XLA pass.
    HW_pad = ((HW + 1023) // 1024) * 1024
    S = HW_pad // 128                                   # sublane rows per plane, multiple of 8

    # Pure reshapes only (Cin == 1): no NCHW <-> NHWC transpose passes.
    x_flat = x_nchw.reshape(N, HW)
    if HW_pad != HW:
        x_flat = jnp.pad(x_flat, ((0, 0), (0, HW_pad - HW)))
    x4 = x_flat.reshape(N, 1, S, 128)                   # (N, 1, S, 128)

    w = weight_oi.reshape(Cout).astype(jnp.float32)     # (Cout,)
    b = bias_o.reshape(Cout).astype(jnp.float32)        # (Cout,)

    itemsize = jnp.dtype(x_nchw.dtype).itemsize
    bn, bs = _choose_tiling(N, Cout, S, itemsize)
    grid = (N // bn, S // bs)

    cost = pl.CostEstimate(
        flops=2 * N * Cout * HW_pad,
        transcendentals=0,
        bytes_accessed=(N * HW_pad + N * Cout * HW_pad) * itemsize + 2 * Cout * 4,
    )

    out4 = pl.pallas_call(
        _conv1x1_scale_bias_kernel,
        out_shape=jax.ShapeDtypeStruct((N, Cout, S, 128), x_nchw.dtype),
        grid=grid,
        in_specs=[
            pl.BlockSpec(memory_space=pltpu.MemorySpace.SMEM),              # w scalars
            pl.BlockSpec(memory_space=pltpu.MemorySpace.SMEM),              # b scalars
            pl.BlockSpec((bn, 1, bs, 128), lambda n, s: (n, 0, s, 0)),      # x block
        ],
        out_specs=pl.BlockSpec((bn, Cout, bs, 128), lambda n, s: (n, 0, s, 0)),
        compiler_params=pltpu.CompilerParams(
            dimension_semantics=("parallel", "parallel"),
            vmem_limit_bytes=32 << 20,   # above the ~8 MiB double-buffered footprint everywhere
        ),
        cost_estimate=cost,
    )(w, b, x4)

    out = out4.reshape(N, Cout, HW_pad)[:, :, :HW].reshape(N, Cout, H, W)
    return out


def unet_mixer(x_nchw):
    # TODO(synk): UNet_mixer is not defined in the provided PyTorch source; passthrough.
    return x_nchw


def mymodel_forward(x_nchw, params):
    down1 = conv1x1_cin1_nchw(x_nchw, params["conv1_w"], params["conv1_b"])
    u1 = unet_mixer(down1)
    return u1


def init_params(key):
    # nn.Conv2d(in_channels=1, out_channels=3, kernel_size=1, bias=True)
    kw, kb = jax.random.split(key)
    conv1_w = jax.random.normal(kw, (3, 1), dtype=jnp.float32)  # (Cout, Cin)
    conv1_b = jax.random.normal(kb, (3,), dtype=jnp.float32) * 0.1
    return {"conv1_w": conv1_w, "conv1_b": conv1_b}


if __name__ == "__main__":
    key = jax.random.PRNGKey(0)
    k_x, k_p = jax.random.split(key)

    # conv1 expects 1 input channel; small spatial size (H*W = 256, padded to 1024 internally).
    x = jax.random.normal(k_x, (2, 1, 16, 16), dtype=jnp.float32)
    params = init_params(k_p)

    y = jax.jit(mymodel_forward)(x, params)
    y = jax.block_until_ready(y)
    assert y.shape == (2, 3, 16, 16), y.shape

    # Sanity check against a pure-JAX reference of the same math.
    ref = (
        jnp.einsum("nihw,oi->nohw", x, params["conv1_w"])
        + params["conv1_b"][None, :, None, None]
    )
    assert jnp.allclose(y, ref, atol=1e-5, rtol=1e-5), float(jnp.max(jnp.abs(y - ref)))

    print("KERNEL_OK")
</pallas_src>

<mosaic_0001>
module attributes {stable_mosaic.version = 11 : i64} {
  func.func @_conv1x1_scale_bias_kernel(%arg0: i32, %arg1: i32, %arg2: memref<3xf32, #tpu.memory_space<smem>>, %arg3: memref<3xf32, #tpu.memory_space<smem>>, %arg4: memref<2x1x8x128xf32, #tpu.memory_space<vmem>>, %arg5: memref<2x3x8x128xf32, #tpu.memory_space<vmem>>) attributes {dimension_semantics = [#tpu.dimension_semantics<parallel>, #tpu.dimension_semantics<parallel>], iteration_bounds = array<i64: 1, 1>, scalar_prefetch = 0 : i64, scratch_operands = 0 : i64, tpu.core_type = #tpu.core_type<tc>, window_params = [{transform_indices = @transform_0, window_bounds = array<i64: 3>}, {transform_indices = @transform_1, window_bounds = array<i64: 3>}, {transform_indices = @transform_2, window_bounds = array<i64: 2, 1, 8, 128>}, {transform_indices = @transform_3, window_bounds = array<i64: 2, 3, 8, 128>}]} {
    %c0 = arith.constant 0 : index
    %c0_0 = arith.constant 0 : index
    %c0_1 = arith.constant 0 : index
    %c0_2 = arith.constant 0 : index
    %0 = vector.load %arg4[%c0, %c0_0, %c0_1, %c0_2] : memref<2x1x8x128xf32, #tpu.memory_space<vmem>>, vector<2x1x8x128xf32>
    %1 = vector.shape_cast %0 : vector<2x1x8x128xf32> to vector<2x8x128xf32>
    %c0_3 = arith.constant 0 : index
    %2 = memref.load %arg2[%c0_3] : memref<3xf32, #tpu.memory_space<smem>>
    %c1 = arith.constant 1 : index
    %3 = memref.load %arg2[%c1] : memref<3xf32, #tpu.memory_space<smem>>
    %c2 = arith.constant 2 : index
    %4 = memref.load %arg2[%c2] : memref<3xf32, #tpu.memory_space<smem>>
    %c0_4 = arith.constant 0 : index
    %5 = memref.load %arg3[%c0_4] : memref<3xf32, #tpu.memory_space<smem>>
    %c1_5 = arith.constant 1 : index
    %6 = memref.load %arg3[%c1_5] : memref<3xf32, #tpu.memory_space<smem>>
    %c2_6 = arith.constant 2 : index
    %7 = memref.load %arg3[%c2_6] : memref<3xf32, #tpu.memory_space<smem>>
    %8 = vector.broadcast %2 : f32 to vector<2x8x128xf32>
    %9 = arith.mulf %1, %8 : vector<2x8x128xf32>
    %10 = vector.broadcast %5 : f32 to vector<2x8x128xf32>
    %11 = arith.addf %9, %10 : vector<2x8x128xf32>
    %c0_7 = arith.constant 0 : index
    %c0_8 = arith.constant 0 : index
    %c0_9 = arith.constant 0 : index
    %c0_10 = arith.constant 0 : index
    %12 = vector.load %arg5[%c0_7, %c0_8, %c0_9, %c0_10] : memref<2x3x8x128xf32, #tpu.memory_space<vmem>>, vector<2x1x8x128xf32>
    %13 = vector.shape_cast %12 : vector<2x1x8x128xf32> to vector<2x8x128xf32>
    %14 = vector.shape_cast %11 : vector<2x8x128xf32> to vector<2x1x8x128xf32>
    tpu.vector_store %arg5[%c0_7, %c0_8, %c0_9, %c0_10], %14 {strides = array<i32>} : memref<2x3x8x128xf32, #tpu.memory_space<vmem>>, vector<2x1x8x128xf32>,
    %15 = vector.broadcast %3 : f32 to vector<2x8x128xf32>
    %16 = arith.mulf %1, %15 : vector<2x8x128xf32>
    %17 = vector.broadcast %6 : f32 to vector<2x8x128xf32>
    %18 = arith.addf %16, %17 : vector<2x8x128xf32>
    %c0_11 = arith.constant 0 : index
    %c1_12 = arith.constant 1 : index
    %c0_13 = arith.constant 0 : index
    %c0_14 = arith.constant 0 : index
    %19 = vector.load %arg5[%c0_11, %c1_12, %c0_13, %c0_14] : memref<2x3x8x128xf32, #tpu.memory_space<vmem>>, vector<2x1x8x128xf32>
    %20 = vector.shape_cast %19 : vector<2x1x8x128xf32> to vector<2x8x128xf32>
    %21 = vector.shape_cast %18 : vector<2x8x128xf32> to vector<2x1x8x128xf32>
    tpu.vector_store %arg5[%c0_11, %c1_12, %c0_13, %c0_14], %21 {strides = array<i32>} : memref<2x3x8x128xf32, #tpu.memory_space<vmem>>, vector<2x1x8x128xf32>,
    %22 = vector.broadcast %4 : f32 to vector<2x8x128xf32>
    %23 = arith.mulf %1, %22 : vector<2x8x128xf32>
    %24 = vector.broadcast %7 : f32 to vector<2x8x128xf32>
    %25 = arith.addf %23, %24 : vector<2x8x128xf32>
    %c0_15 = arith.constant 0 : index
    %c2_16 = arith.constant 2 : index
    %c0_17 = arith.constant 0 : index
    %c0_18 = arith.constant 0 : index
    %26 = vector.load %arg5[%c0_15, %c2_16, %c0_17, %c0_18] : memref<2x3x8x128xf32, #tpu.memory_space<vmem>>, vector<2x1x8x128xf32>
    %27 = vector.shape_cast %26 : vector<2x1x8x128xf32> to vector<2x8x128xf32>
    %28 = vector.shape_cast %25 : vector<2x8x128xf32> to vector<2x1x8x128xf32>
    tpu.vector_store %arg5[%c0_15, %c2_16, %c0_17, %c0_18], %28 {strides = array<i32>} : memref<2x3x8x128xf32, #tpu.memory_space<vmem>>, vector<2x1x8x128xf32>,
    return
  }
  func.func @transform_0(%arg0: i32, %arg1: i32) -> i32 {
    %c0_i32 = arith.constant 0 : i32
    %c0_i32_0 = arith.constant 0 : i32
    return %c0_i32 : i32
  }
  func.func @transform_1(%arg0: i32, %arg1: i32) -> i32 {
    %c0_i32 = arith.constant 0 : i32
    %c0_i32_0 = arith.constant 0 : i32
    return %c0_i32 : i32
  }
  func.func @transform_2(%arg0: i32, %arg1: i32) -> (i32, i32, i32, i32) {
    %c0_i32 = arith.constant 0 : i32
    %c0_i32_0 = arith.constant 0 : i32
    %c0_i32_1 = arith.constant 0 : i32
    return %arg0, %c0_i32, %arg1, %c0_i32_0 : i32, i32, i32, i32
  }
  func.func @transform_3(%arg0: i32, %arg1: i32) -> (i32, i32, i32, i32) {
    %c0_i32 = arith.constant 0 : i32
    %c0_i32_0 = arith.constant 0 : i32
    %c0_i32_1 = arith.constant 0 : i32
    return %arg0, %c0_i32, %arg1, %c0_i32_0 : i32, i32, i32, i32
  }
}

</mosaic_0001>

<llo_original>
// kernel: mymodel_forward.1
$region0: #{mymodel_forward.1}
  #allocation0 [shape = 'u32[]', space=smem, size = 0x4, offset = 0x4, fixed_abs, tag = 'smem constant byte address 0x4 - core index']
  #allocation1 [shape = 'u32[72,128]{1,0:T(1,128)}', space=vmem, size = 0x9000, scoped, tag = 'internal scratch']
  %s0 = inlined_call_operand.vmem [shape: f32[3], index: 0, kind: input, shape index: {}]
  %s1 = inlined_call_operand.vmem [shape: f32[3], index: 1, kind: input, shape index: {}]
  %s2 = inlined_call_operand.vmem [shape: f32[2,1,8,128], index: 2, kind: input, shape index: {}]
  %s3 = inlined_call_operand.vmem [shape: f32[2,3,8,128], index: 3, kind: output, shape index: {}]
  %s4 = sld [smem:[#allocation0]]
  $region30: #{mymodel_forward.1} parent=0
    _
  %s6 = ssub.s32 1, %s4
  %s7 = scalar_select 0, %s6, %s4
  $region1: #{mymodel_forward.1} parent=0
    #allocation2 [shape = 'u8[512]{0}', space=smem, size = 0x200, scoped, tag = 'input window, operand 0, single buffered']
    #allocation3 [shape = 's32[1]{0}', space=sflag, size = 0x4, scoped, tag = 'scoped memory for mymodel_forward.1']
    #allocation4 [shape = 'u8[512]{0}', space=smem, size = 0x200, scoped, tag = 'input window, operand 1, single buffered']
    #allocation5 [shape = 's32[1]{0}', space=sflag, size = 0x4, scoped, tag = 'scoped memory for mymodel_forward.1']
    %8 = vsyncpa [#allocation3], 0
    %9 = vsyncpa [#allocation5], 0
    // Predicated region
    $region2: #{mymodel_forward.1} parent=1 // pred_check
      _
    $region3: #{mymodel_forward.1} parent=1 // pred_check_branch
      %11 = sbr.rel (0) target = $region5
    $region4: #{mymodel_forward.1} parent=1 // pred_region
      %13 = vsyncadd [#allocation3], 0
      %s15 = sshll.u32 %s0, 4
      %s16 = int_to_ptr.vmem [resolvable:$true] %s15
      %18 = dma.vmem_to_smem %s16, 16, [#allocation2], [#allocation3]
    $region5: #{mymodel_forward.1} parent=1 // pred_fallthru
      _
    // Predicated region
    $region6: #{mymodel_forward.1} parent=1 // pred_check
      _
    $region7: #{mymodel_forward.1} parent=1 // pred_check_branch
      %20 = sbr.rel (0) target = $region9
    $region8: #{mymodel_forward.1} parent=1 // pred_region
      %22 = vsyncadd [#allocation5], 0
      %s24 = sshll.u32 %s1, 4
      %s25 = int_to_ptr.vmem [resolvable:$true] %s24
      %27 = dma.vmem_to_smem %s25, 16, [#allocation4], [#allocation5]
    $region9: #{mymodel_forward.1} parent=1 // pred_fallthru
      _
    // Predicated region
    $region10: #{mymodel_forward.1} parent=1 // pred_check
      _
    $region11: #{mymodel_forward.1} parent=1 // pred_check_branch
      %29 = sbr.rel (0) target = $region13
    $region12: #{mymodel_forward.1} parent=1 // pred_region
      _
    $region13: #{mymodel_forward.1} parent=1 // pred_fallthru
      _
    // Predicated region
    $region14: #{mymodel_forward.1} parent=1 // pred_check
      _
    $region15: #{mymodel_forward.1} parent=1 // pred_check_branch
      %31 = sbr.rel (0) target = $region17
    $region16: #{mymodel_forward.1} parent=1 // pred_region
      %33 = dma.done [#allocation3], 16
    $region17: #{mymodel_forward.1} parent=1 // pred_fallthru
      _
    // Predicated region
    $region18: #{mymodel_forward.1} parent=1 // pred_check
      _
    $region19: #{mymodel_forward.1} parent=1 // pred_check_branch
      %35 = sbr.rel (0) target = $region21
    $region20: #{mymodel_forward.1} parent=1 // pred_region
      %37 = dma.done [#allocation5], 16
    $region21: #{mymodel_forward.1} parent=1 // pred_fallthru
      _
    %38 = sfence
    %v39 = vld [vmem:[%s2] sm:$0xff]
    %v40 = vld [vmem:[%s2 + $0x8] sm:$0xff]
    %s41 = sld [smem:[#allocation2]]
    %s42 = sld [smem:[#allocation2 + $0x1]]
    %s43 = sld [smem:[#allocation2 + $0x2]]
    %s44 = sld [smem:[#allocation4]]
    %s45 = sld [smem:[#allocation4 + $0x1]]
    %s46 = sld [smem:[#allocation4 + $0x2]]
    %v47 = vstv %s41
    %v48 = vmul.f32 %v39, %v47
    %v49 = vmul.f32 %v40, %v47
    %v50 = vstv %s44
    %v51 = vadd.f32 %v48, %v50
    %v52 = vadd.f32 %v49, %v50
    %53 = vst [vmem:[%s3] sm:$0xff] %v51
    %54 = vst [vmem:[%s3 + $0x18] sm:$0xff] %v52
    %v55 = vstv %s42
    %v56 = vmul.f32 %v39, %v55
    %v57 = vmul.f32 %v40, %v55
    %v58 = vstv %s45
    %v59 = vadd.f32 %v56, %v58
    %v60 = vadd.f32 %v57, %v58
    %s61 = scalar_lea.vmem %s3, 8
    %62 = vst [vmem:[%s61] sm:$0xff] %v59
    %63 = vst [vmem:[%s61 + $0x18] sm:$0xff] %v60
    %v64 = vstv %s43
    %v65 = vmul.f32 %v39, %v64
    %v66 = vmul.f32 %v40, %v64
    %v67 = vstv %s46
    %v68 = vadd.f32 %v65, %v67
    %v69 = vadd.f32 %v66, %v67
    %s70 = scalar_lea.vmem %s3, 16
    %71 = vst [vmem:[%s70] sm:$0xff] %v68
    %72 = vst [vmem:[%s70 + $0x18] sm:$0xff] %v69
    // Predicated region
    $region22: #{mymodel_forward.1} parent=1 // pred_check
      _
    $region23: #{mymodel_forward.1} parent=1 // pred_check_branch
      %74 = sbr.rel (0) target = $region25
    $region24: #{mymodel_forward.1} parent=1 // pred_region
      _
    $region25: #{mymodel_forward.1} parent=1 // pred_fallthru
      _
    // Predicated region
    $region26: #{mymodel_forward.1} parent=1 // pred_check
      _
    $region27: #{mymodel_forward.1} parent=1 // pred_check_branch
      %76 = sbr.rel (0) target = $region29
    $region28: #{mymodel_forward.1} parent=1 // pred_region
      _
    $region29: #{mymodel_forward.1} parent=1 // pred_fallthru
      _
    %77 = vsyncpa [#allocation3], 1
    %78 = vsyncpa [#allocation5], 1

</llo_original>
